<compile_context>
chip_gen: v6e
topology: v6e:2x2x1
jax: 0.10.0
libtpu: 0.0.40
codegen_flags: <defaults>
</compile_context>

<pallas_src>
import functools

import jax
import jax.numpy as jnp
from jax.experimental import pallas as pl
from jax.experimental.pallas import tpu as pltpu

_LANES = 128


def _round_up(x, m):
    return (x + m - 1) // m * m


def _ns_smooth_l1_kernel(pred_ref, target_ref, side_ref, rho_min_ref, rho_max_ref,
                         out_ref, *, groups, dims, beta, n_total):
    """One N-lane tile (samples on the lane axis).

    pred_ref:   (groups*dims, tn)  native dtype
    target_ref: (dims, tn)         native dtype
    side_ref:   (groups+1, tn)     f32; rows 0..groups-1 = aa, row groups = weight
    rho_min/rho_max: (num_trees,)  SMEM scalars
    out_ref:    (1, 1, 128)        lane-dense partial-sum block for this tile
    """
    tn = pred_ref.shape[1]
    num_trees = groups // 2
    inv_2beta = 0.5 / beta          # trace-time constant: no per-element divide
    half_beta = 0.5 * beta

    # Lane-validity mask for the ragged last tile (no wrapper-side padding).
    lane = jax.lax.broadcasted_iota(jnp.int32, (1, tn), 1)
    valid = (pl.program_id(0) * tn + lane) < n_total                 # (1, tn)

    tgt = target_ref[...].astype(jnp.float32)                        # (D, tn)
    side = side_ref[...]                                             # (G+1, tn) f32
    w = side[groups:groups + 1, :]                                   # (1, tn)

    # Unrolled per-group loop over static sublane slices of the pred ref:
    # only (D, tn) f32 temporaries are live at any time (no (tn, G*D) buffers).
    acc = jnp.zeros((1, tn), jnp.float32)
    for tr in range(num_trees):
        a0 = side[2 * tr:2 * tr + 1, :]                              # (1, tn)
        a1 = side[2 * tr + 1:2 * tr + 2, :]                          # (1, tn)
        sel0 = a0 >= a1            # tie -> node 0 (matches jnp.argmax; torch ties unspecified)
        rmin = rho_min_ref[tr]
        rmax = rho_max_ref[tr]
        decays = (jnp.where(sel0, rmax, rmin), jnp.where(sel0, rmin, rmax))
        for node in range(2):
            g = 2 * tr + node
            x = pred_ref[pl.ds(g * dims, dims), :].astype(jnp.float32)   # (D, tn)
            diff = jnp.abs(x - tgt)
            l = jnp.where(diff < beta, inv_2beta * diff * diff, diff - half_beta)
            acc = acc + decays[node] * jnp.sum(l, axis=0, keepdims=True)

    # Apply the per-sample weight; mask invalid lanes BEFORE the reduction
    # (ragged-tile garbage could be inf/NaN and 0 * inf = NaN would poison it).
    partial = jnp.sum(jnp.where(valid, acc * w, 0.0))
    out_ref[...] = jnp.broadcast_to(partial, (1, 1, 128)).astype(jnp.float32)


def ns_smooth_l1_loss(pred, aa, target, weight, rho_min, rho_max, *,
                      beta=1.0, reduction='mean', avg_factor=None,
                      loss_weight=1.0, tile_n=8192):
    """JAX/Pallas equivalent of NSSmoothL1Loss.forward.

    pred:   (N, groups * D)   target: (N, D)   aa: (N, groups)
    weight: (N,) or (N, K)    (column 0 is used, like the PyTorch module)
    rho_min/rho_max: (groups // 2,) per-tree decay factors.
    """
    assert beta > 0
    N, GD = pred.shape
    D = target.shape[1]
    assert GD % D == 0
    groups = GD // D
    assert groups % 2 == 0

    if weight is None:
        weight = jnp.ones((N,), jnp.float32)
    if weight.ndim == 2:           # module does torch.unsqueeze(weight[:, 0], 1)
        weight = weight[:, 0]

    # ---- lane-dense layout: sample axis N on the 128-lane axis ---------------
    # For small GD (the bbox-regression case) this is the dominant perf lever;
    # for GD that is already a large multiple of 128 the row layout would also be
    # fine.  Ideally the producer emits pred already as (GD, N).
    # TODO(synk): for very large GD add a second grid axis over GD chunks instead
    # of shrinking the lane tile.
    pred_t = pred.T                                                  # (GD, N), native dtype
    target_t = target.T                                              # (D, N),  native dtype
    side = jnp.concatenate(                                          # (G+1, N) f32
        [aa.astype(jnp.float32), weight.reshape(N, 1).astype(jnp.float32)],
        axis=1).T

    # ---- lane-tile size: as big as the VMEM budget allows, >=2 tiles for v7x --
    itemsize_p = jnp.dtype(pred.dtype).itemsize
    itemsize_t = jnp.dtype(target.dtype).itemsize
    in_bytes_per_lane = 2 * (GD * itemsize_p + D * itemsize_t + (groups + 1) * 4)
    tmp_bytes_per_lane = (3 * D + 8) * 4 * 4      # in-kernel f32 temporaries + slack
    bytes_per_lane = in_bytes_per_lane + tmp_bytes_per_lane
    vmem_budget = 20 * 1024 * 1024                # headroom under the 32 MiB scoped limit
    tn_budget = max(_LANES, (vmem_budget // bytes_per_lane) // _LANES * _LANES)

    if N <= _LANES:
        tn = N                                    # single full-extent block
    else:
        tn = min(tile_n, tn_budget, _round_up(pl.cdiv(N, 2), _LANES))
        tn = max(tn, _LANES)
    num_tiles = pl.cdiv(N, tn)

    kernel = functools.partial(_ns_smooth_l1_kernel, groups=groups, dims=D,
                               beta=float(beta), n_total=N)

    bytes_accessed = int(pred.size * itemsize_p + target.size * itemsize_t
                         + N * (groups + 1) * 4 + num_tiles * 128 * 4)
    cost = pl.CostEstimate(flops=9 * N * GD, transcendentals=0,
                           bytes_accessed=bytes_accessed)

    partials = pl.pallas_call(
        kernel,
        out_shape=jax.ShapeDtypeStruct((num_tiles, 1, 128), jnp.float32),
        grid=(num_tiles,),
        in_specs=[
            pl.BlockSpec((GD, tn), lambda i: (0, i)),                 # pred tile
            pl.BlockSpec((D, tn), lambda i: (0, i)),                  # target tile
            pl.BlockSpec((groups + 1, tn), lambda i: (0, i)),         # aa + weight tile
            pl.BlockSpec(memory_space=pltpu.MemorySpace.SMEM),        # rho_min
            pl.BlockSpec(memory_space=pltpu.MemorySpace.SMEM),        # rho_max
        ],
        out_specs=pl.BlockSpec((1, 1, 128), lambda i: (i, 0, 0)),
        compiler_params=pltpu.CompilerParams(
            dimension_semantics=("parallel",),
            vmem_limit_bytes=32 * 1024 * 1024),
        cost_estimate=cost,
    )(pred_t, target_t, side,
      rho_min.astype(jnp.float32), rho_max.astype(jnp.float32))

    s = jnp.sum(partials[:, 0, 0])

    if reduction == 'mean':
        denom = (N * groups) if avg_factor is None else avg_factor
        loss = s / denom
    elif reduction == 'sum':
        loss = s
    else:
        # TODO(synk): reduction='none' would require returning the full (N, groups)
        # loss map instead of the scalar reduction.
        raise NotImplementedError("reduction='none' not supported")
    return loss_weight * 2.0 * loss / groups


def _reference_loss(pred, aa, target, weight, rho_min, rho_max, *,
                    beta=1.0, loss_weight=1.0):
    """Pure-JAX reference mirroring the PyTorch semantics (reduction='mean')."""
    N, GD = pred.shape
    D = target.shape[1]
    G = GD // D
    diff = jnp.abs(pred.reshape(N, G, D) - target[:, None, :])
    l = jnp.where(diff < beta, 0.5 * diff * diff / beta, diff - 0.5 * beta)
    loss_ns = l.sum(-1).reshape(N, -1, 2)                          # (N, T, 2)
    aa_r = aa.reshape(N, -1, 2)
    target_n = jnp.argmax(aa_r, axis=2)                            # (N, T)
    node_idx = jnp.arange(2)[None, None, :]
    decay = jnp.where(node_idx == target_n[..., None],
                      rho_max[None, :, None], rho_min[None, :, None])
    loss = (loss_ns * decay).reshape(N, G) * weight[:, None]
    loss = loss.mean()
    return loss_weight * 2.0 * loss / G


if __name__ == "__main__":
    key = jax.random.PRNGKey(0)
    k_pred, k_tgt, k_aa, k_w, k_rmin, k_rmax = jax.random.split(key, 6)

    D = 4            # regression target dims (target.size(1))
    groups = 4       # num nodes; num_nodes=2 -> num_trees=2
    num_trees = groups // 2

    # Deterministic stand-ins for np.random.uniform(0.1, 0.3) / (0.9, 1.1).
    rho_min = jax.random.uniform(k_rmin, (num_trees,), minval=0.1, maxval=0.3)
    rho_max = jax.random.uniform(k_rmax, (num_trees,), minval=0.9, maxval=1.1)

    # Check both the single-tile path (N=8) and the multi-tile ragged path (N=300).
    for N in (8, 300):
        pred = jax.random.normal(k_pred, (N, groups * D), dtype=jnp.float32)
        target = jax.random.normal(k_tgt, (N, D), dtype=jnp.float32)
        aa = jax.nn.softmax(jax.random.normal(k_aa, (N, groups)), axis=-1)
        weight = jax.random.uniform(k_w, (N, D), dtype=jnp.float32)   # column 0 is used

        loss = ns_smooth_l1_loss(pred, aa, target, weight, rho_min, rho_max,
                                 beta=1.0, reduction='mean', loss_weight=1.0)
        loss = jax.block_until_ready(loss)

        ref = _reference_loss(pred, aa, target, weight[:, 0], rho_min, rho_max,
                              beta=1.0, loss_weight=1.0)
        assert jnp.allclose(loss, ref, rtol=1e-5, atol=1e-5), (N, loss, ref)

    print("KERNEL_OK")
</pallas_src>

<mosaic_0001>
module attributes {stable_mosaic.version = 11 : i64} {
  func.func @_ns_smooth_l1_kernel(%arg0: i32, %arg1: memref<16x8xf32, #tpu.memory_space<vmem>>, %arg2: memref<4x8xf32, #tpu.memory_space<vmem>>, %arg3: memref<5x8xf32, #tpu.memory_space<vmem>>, %arg4: memref<2xf32, #tpu.memory_space<smem>>, %arg5: memref<2xf32, #tpu.memory_space<smem>>, %arg6: memref<1x1x128xf32, #tpu.memory_space<vmem>>) attributes {dimension_semantics = [#tpu.dimension_semantics<parallel>], iteration_bounds = array<i64: 1>, scalar_prefetch = 0 : i64, scratch_operands = 0 : i64, tpu.core_type = #tpu.core_type<tc>, window_params = [{transform_indices = @transform_0, window_bounds = array<i64: 16, 8>}, {transform_indices = @transform_1, window_bounds = array<i64: 4, 8>}, {transform_indices = @transform_2, window_bounds = array<i64: 5, 8>}, {transform_indices = @transform_3, window_bounds = array<i64: 2>}, {transform_indices = @transform_4, window_bounds = array<i64: 2>}, {transform_indices = @transform_5, window_bounds = array<i64: 1, 1, 128>}]} {
    %0 = tpu.iota {dimensions = array<i32: 1>} : vector<1x8xi32>
    %c8_i32 = arith.constant 8 : i32
    %1 = arith.muli %arg0, %c8_i32 : i32
    %2 = vector.broadcast %1 : i32 to vector<1x8xi32>
    %3 = arith.addi %2, %0 : vector<1x8xi32>
    %c8_i32_0 = arith.constant 8 : i32
    %4 = vector.broadcast %c8_i32_0 : i32 to vector<1x8xi32>
    %5 = arith.cmpi slt, %3, %4 : vector<1x8xi32>
    %c0 = arith.constant 0 : index
    %c0_1 = arith.constant 0 : index
    %6 = vector.load %arg2[%c0, %c0_1] : memref<4x8xf32, #tpu.memory_space<vmem>>, vector<4x8xf32>
    %c0_2 = arith.constant 0 : index
    %c0_3 = arith.constant 0 : index
    %7 = vector.load %arg3[%c0_2, %c0_3] : memref<5x8xf32, #tpu.memory_space<vmem>>, vector<5x8xf32>
    %8 = vector.extract_strided_slice %7 {offsets = [4, 0], sizes = [1, 8], strides = [1, 1]} : vector<5x8xf32> to vector<1x8xf32>
    %cst = arith.constant 0.000000e+00 : f32
    %9 = vector.broadcast %cst : f32 to vector<1x8xf32>
    %10 = vector.extract_strided_slice %7 {offsets = [0, 0], sizes = [1, 8], strides = [1, 1]} : vector<5x8xf32> to vector<1x8xf32>
    %11 = vector.extract_strided_slice %7 {offsets = [1, 0], sizes = [1, 8], strides = [1, 1]} : vector<5x8xf32> to vector<1x8xf32>
    %12 = arith.cmpf oge, %10, %11 : vector<1x8xf32>
    %c0_4 = arith.constant 0 : index
    %13 = memref.load %arg4[%c0_4] : memref<2xf32, #tpu.memory_space<smem>>
    %c0_5 = arith.constant 0 : index
    %14 = memref.load %arg5[%c0_5] : memref<2xf32, #tpu.memory_space<smem>>
    %15 = vector.broadcast %14 : f32 to vector<1x8xf32>
    %16 = vector.broadcast %13 : f32 to vector<1x8xf32>
    %17 = arith.select %12, %15, %16 : vector<1x8xi1>, vector<1x8xf32>
    %18 = vector.broadcast %13 : f32 to vector<1x8xf32>
    %19 = vector.broadcast %14 : f32 to vector<1x8xf32>
    %20 = arith.select %12, %18, %19 : vector<1x8xi1>, vector<1x8xf32>
    %c0_6 = arith.constant 0 : index
    %c0_7 = arith.constant 0 : index
    %21 = vector.load %arg1[%c0_6, %c0_7] : memref<16x8xf32, #tpu.memory_space<vmem>>, vector<4x8xf32>
    %22 = arith.subf %21, %6 : vector<4x8xf32>
    %23 = math.absf %22 : vector<4x8xf32>
    %cst_8 = arith.constant 1.000000e+00 : f32
    %24 = vector.broadcast %cst_8 : f32 to vector<4x8xf32>
    %25 = arith.cmpf olt, %23, %24 : vector<4x8xf32>
    %cst_9 = arith.constant 5.000000e-01 : f32
    %26 = vector.broadcast %cst_9 : f32 to vector<4x8xf32>
    %27 = arith.mulf %26, %23 : vector<4x8xf32>
    %28 = arith.mulf %27, %23 : vector<4x8xf32>
    %cst_10 = arith.constant 5.000000e-01 : f32
    %29 = vector.broadcast %cst_10 : f32 to vector<4x8xf32>
    %30 = arith.subf %23, %29 : vector<4x8xf32>
    %31 = arith.select %25, %28, %30 : vector<4x8xi1>, vector<4x8xf32>
    %cst_11 = arith.constant dense<0.000000e+00> : vector<8xf32>
    %32 = vector.multi_reduction <add>, %31, %cst_11 [0] : vector<4x8xf32> to vector<8xf32>
    %33 = vector.shape_cast %32 : vector<8xf32> to vector<1x8xf32>
    %34 = arith.mulf %17, %33 : vector<1x8xf32>
    %35 = arith.addf %9, %34 : vector<1x8xf32>
    %c4 = arith.constant 4 : index
    %c0_12 = arith.constant 0 : index
    %36 = vector.load %arg1[%c4, %c0_12] : memref<16x8xf32, #tpu.memory_space<vmem>>, vector<4x8xf32>
    %37 = arith.subf %36, %6 : vector<4x8xf32>
    %38 = math.absf %37 : vector<4x8xf32>
    %cst_13 = arith.constant 1.000000e+00 : f32
    %39 = vector.broadcast %cst_13 : f32 to vector<4x8xf32>
    %40 = arith.cmpf olt, %38, %39 : vector<4x8xf32>
    %cst_14 = arith.constant 5.000000e-01 : f32
    %41 = vector.broadcast %cst_14 : f32 to vector<4x8xf32>
    %42 = arith.mulf %41, %38 : vector<4x8xf32>
    %43 = arith.mulf %42, %38 : vector<4x8xf32>
    %cst_15 = arith.constant 5.000000e-01 : f32
    %44 = vector.broadcast %cst_15 : f32 to vector<4x8xf32>
    %45 = arith.subf %38, %44 : vector<4x8xf32>
    %46 = arith.select %40, %43, %45 : vector<4x8xi1>, vector<4x8xf32>
    %cst_16 = arith.constant dense<0.000000e+00> : vector<8xf32>
    %47 = vector.multi_reduction <add>, %46, %cst_16 [0] : vector<4x8xf32> to vector<8xf32>
    %48 = vector.shape_cast %47 : vector<8xf32> to vector<1x8xf32>
    %49 = arith.mulf %20, %48 : vector<1x8xf32>
    %50 = arith.addf %35, %49 : vector<1x8xf32>
    %51 = vector.extract_strided_slice %7 {offsets = [2, 0], sizes = [1, 8], strides = [1, 1]} : vector<5x8xf32> to vector<1x8xf32>
    %52 = vector.extract_strided_slice %7 {offsets = [3, 0], sizes = [1, 8], strides = [1, 1]} : vector<5x8xf32> to vector<1x8xf32>
    %53 = arith.cmpf oge, %51, %52 : vector<1x8xf32>
    %c1 = arith.constant 1 : index
    %54 = memref.load %arg4[%c1] : memref<2xf32, #tpu.memory_space<smem>>
    %c1_17 = arith.constant 1 : index
    %55 = memref.load %arg5[%c1_17] : memref<2xf32, #tpu.memory_space<smem>>
    %56 = vector.broadcast %55 : f32 to vector<1x8xf32>
    %57 = vector.broadcast %54 : f32 to vector<1x8xf32>
    %58 = arith.select %53, %56, %57 : vector<1x8xi1>, vector<1x8xf32>
    %59 = vector.broadcast %54 : f32 to vector<1x8xf32>
    %60 = vector.broadcast %55 : f32 to vector<1x8xf32>
    %61 = arith.select %53, %59, %60 : vector<1x8xi1>, vector<1x8xf32>
    %c8 = arith.constant 8 : index
    %c0_18 = arith.constant 0 : index
    %62 = vector.load %arg1[%c8, %c0_18] : memref<16x8xf32, #tpu.memory_space<vmem>>, vector<4x8xf32>
    %63 = arith.subf %62, %6 : vector<4x8xf32>
    %64 = math.absf %63 : vector<4x8xf32>
    %cst_19 = arith.constant 1.000000e+00 : f32
    %65 = vector.broadcast %cst_19 : f32 to vector<4x8xf32>
    %66 = arith.cmpf olt, %64, %65 : vector<4x8xf32>
    %cst_20 = arith.constant 5.000000e-01 : f32
    %67 = vector.broadcast %cst_20 : f32 to vector<4x8xf32>
    %68 = arith.mulf %67, %64 : vector<4x8xf32>
    %69 = arith.mulf %68, %64 : vector<4x8xf32>
    %cst_21 = arith.constant 5.000000e-01 : f32
    %70 = vector.broadcast %cst_21 : f32 to vector<4x8xf32>
    %71 = arith.subf %64, %70 : vector<4x8xf32>
    %72 = arith.select %66, %69, %71 : vector<4x8xi1>, vector<4x8xf32>
    %cst_22 = arith.constant dense<0.000000e+00> : vector<8xf32>
    %73 = vector.multi_reduction <add>, %72, %cst_22 [0] : vector<4x8xf32> to vector<8xf32>
    %74 = vector.shape_cast %73 : vector<8xf32> to vector<1x8xf32>
    %75 = arith.mulf %58, %74 : vector<1x8xf32>
    %76 = arith.addf %50, %75 : vector<1x8xf32>
    %c12 = arith.constant 12 : index
    %c0_23 = arith.constant 0 : index
    %77 = vector.load %arg1[%c12, %c0_23] : memref<16x8xf32, #tpu.memory_space<vmem>>, vector<4x8xf32>
    %78 = arith.subf %77, %6 : vector<4x8xf32>
    %79 = math.absf %78 : vector<4x8xf32>
    %cst_24 = arith.constant 1.000000e+00 : f32
    %80 = vector.broadcast %cst_24 : f32 to vector<4x8xf32>
    %81 = arith.cmpf olt, %79, %80 : vector<4x8xf32>
    %cst_25 = arith.constant 5.000000e-01 : f32
    %82 = vector.broadcast %cst_25 : f32 to vector<4x8xf32>
    %83 = arith.mulf %82, %79 : vector<4x8xf32>
    %84 = arith.mulf %83, %79 : vector<4x8xf32>
    %cst_26 = arith.constant 5.000000e-01 : f32
    %85 = vector.broadcast %cst_26 : f32 to vector<4x8xf32>
    %86 = arith.subf %79, %85 : vector<4x8xf32>
    %87 = arith.select %81, %84, %86 : vector<4x8xi1>, vector<4x8xf32>
    %cst_27 = arith.constant dense<0.000000e+00> : vector<8xf32>
    %88 = vector.multi_reduction <add>, %87, %cst_27 [0] : vector<4x8xf32> to vector<8xf32>
    %89 = vector.shape_cast %88 : vector<8xf32> to vector<1x8xf32>
    %90 = arith.mulf %61, %89 : vector<1x8xf32>
    %91 = arith.addf %76, %90 : vector<1x8xf32>
    %92 = arith.mulf %91, %8 : vector<1x8xf32>
    %cst_28 = arith.constant 0.000000e+00 : f32
    %93 = vector.broadcast %cst_28 : f32 to vector<1x8xf32>
    %94 = arith.select %5, %92, %93 : vector<1x8xi1>, vector<1x8xf32>
    %95 = vector.shape_cast %94 : vector<1x8xf32> to vector<1x1x8xf32>
    %cst_29 = arith.constant dense<0.000000e+00> : vector<1xf32>
    %96 = vector.multi_reduction <add>, %95, %cst_29 [1, 2] : vector<1x1x8xf32> to vector<1xf32>
    %97 = vector.shape_cast %96 : vector<1xf32> to vector<1x1x1xf32>
    %98 = vector.extract %97[0, 0, 0] : f32 from vector<1x1x1xf32>
    %99 = vector.broadcast %98 : f32 to vector<1x1x128xf32>
    %c0_30 = arith.constant 0 : index
    %c0_31 = arith.constant 0 : index
    %c0_32 = arith.constant 0 : index
    %100 = vector.load %arg6[%c0_30, %c0_31, %c0_32] : memref<1x1x128xf32, #tpu.memory_space<vmem>>, vector<1x1x128xf32>
    tpu.vector_store %arg6[%c0_30, %c0_31, %c0_32], %99 {strides = array<i32>} : memref<1x1x128xf32, #tpu.memory_space<vmem>>, vector<1x1x128xf32>,
    return
  }
  func.func @transform_0(%arg0: i32) -> (i32, i32) {
    %c0_i32 = arith.constant 0 : i32
    %c0_i32_0 = arith.constant 0 : i32
    return %c0_i32, %arg0 : i32, i32
  }
  func.func @transform_1(%arg0: i32) -> (i32, i32) {
    %c0_i32 = arith.constant 0 : i32
    %c0_i32_0 = arith.constant 0 : i32
    return %c0_i32, %arg0 : i32, i32
  }
  func.func @transform_2(%arg0: i32) -> (i32, i32) {
    %c0_i32 = arith.constant 0 : i32
    %c0_i32_0 = arith.constant 0 : i32
    return %c0_i32, %arg0 : i32, i32
  }
  func.func @transform_3(%arg0: i32) -> i32 {
    %c0_i32 = arith.constant 0 : i32
    %c0_i32_0 = arith.constant 0 : i32
    return %c0_i32 : i32
  }
  func.func @transform_4(%arg0: i32) -> i32 {
    %c0_i32 = arith.constant 0 : i32
    %c0_i32_0 = arith.constant 0 : i32
    return %c0_i32 : i32
  }
  func.func @transform_5(%arg0: i32) -> (i32, i32, i32) {
    %c0_i32 = arith.constant 0 : i32
    %c0_i32_0 = arith.constant 0 : i32
    %c0_i32_1 = arith.constant 0 : i32
    return %arg0, %c0_i32, %c0_i32_0 : i32, i32, i32
  }
}

</mosaic_0001>

<llo_original>
// kernel: tpu_custom_call.1
$region0: #{tpu_custom_call.1}
  #allocation0 [shape = 'u32[]', space=smem, size = 0x4, offset = 0x4, fixed_abs, tag = 'smem constant byte address 0x4 - core index']
  #allocation1 [shape = 'u32[144,128]{1,0:T(1,128)}', space=vmem, size = 0x12000, scoped, tag = 'internal scratch']
  %s0 = inlined_call_operand.vmem [shape: f32[16,8], index: 0, kind: input, shape index: {}]
  %s1 = inlined_call_operand.vmem [shape: f32[4,8], index: 1, kind: input, shape index: {}]
  %s2 = inlined_call_operand.vmem [shape: f32[5,8], index: 2, kind: input, shape index: {}]
  %s3 = inlined_call_operand.vmem [shape: f32[2], index: 3, kind: input, shape index: {}]
  %s4 = inlined_call_operand.vmem [shape: f32[2], index: 4, kind: input, shape index: {}]
  %s5 = inlined_call_operand.hbm [shape: f32[1,1,128], index: 5, kind: output, shape index: {}]
  %s6 = sld [smem:[#allocation0]]
  $region38: #{tpu_custom_call.1} parent=0
    _
  %s8 = ssub.s32 1, %s6
  %s9 = scalar_select 0, %s8, %s6
  $region1: #{tpu_custom_call.1} parent=0
    #allocation2 [shape = 'u8[512]{0}', space=smem, size = 0x200, scoped, tag = 'input window, operand 3, single buffered']
    #allocation3 [shape = 's32[1]{0}', space=sflag, size = 0x4, scoped, tag = 'scoped memory for tpu_custom_call.1']
    #allocation4 [shape = 's32[1]{0}', space=sflag, size = 0x4, scoped, tag = 'scoped memory for tpu_custom_call.1']
    #allocation5 [shape = 'u8[512]{0}', space=smem, size = 0x200, scoped, tag = 'input window, operand 4, single buffered']
    #allocation6 [shape = 's32[1]{0}', space=sflag, size = 0x4, scoped, tag = 'scoped memory for tpu_custom_call.1']
    #allocation7 [shape = 'u8[512]{0}', space=vmem, size = 0x400, scoped, tag = 'output window, operand 0, single buffered']
    %10 = vsyncpa [#allocation4], 0
    %11 = vsyncpa [#allocation6], 0
    %12 = vsyncpa [#allocation3], 0
    // Predicated region
    $region2: #{tpu_custom_call.1} parent=1 // pred_check
      _
    $region3: #{tpu_custom_call.1} parent=1 // pred_check_branch
      %14 = sbr.rel (0) target = $region5
    $region4: #{tpu_custom_call.1} parent=1 // pred_region
      _
    $region5: #{tpu_custom_call.1} parent=1 // pred_fallthru
      _
    // Predicated region
    $region6: #{tpu_custom_call.1} parent=1 // pred_check
      _
    $region7: #{tpu_custom_call.1} parent=1 // pred_check_branch
      %16 = sbr.rel (0) target = $region9
    $region8: #{tpu_custom_call.1} parent=1 // pred_region
      _
    $region9: #{tpu_custom_call.1} parent=1 // pred_fallthru
      _
    // Predicated region
    $region10: #{tpu_custom_call.1} parent=1 // pred_check
      _
    $region11: #{tpu_custom_call.1} parent=1 // pred_check_branch
      %18 = sbr.rel (0) target = $region13
    $region12: #{tpu_custom_call.1} parent=1 // pred_region
      _
    $region13: #{tpu_custom_call.1} parent=1 // pred_fallthru
      _
    // Predicated region
    $region14: #{tpu_custom_call.1} parent=1 // pred_check
      _
    $region15: #{tpu_custom_call.1} parent=1 // pred_check_branch
      %20 = sbr.rel (0) target = $region17
    $region16: #{tpu_custom_call.1} parent=1 // pred_region
      %s22 = ssub.s32 16, 16
      %23 = vsyncadd [#allocation4], %s22
      %s25 = sshll.u32 %s3, 4
      %s26 = int_to_ptr.vmem [resolvable:$true] %s25
      %28 = dma.vmem_to_smem %s26, 16, [#allocation2], [#allocation4]
    $region17: #{tpu_custom_call.1} parent=1 // pred_fallthru
      _
    // Predicated region
    $region18: #{tpu_custom_call.1} parent=1 // pred_check
      _
    $region19: #{tpu_custom_call.1} parent=1 // pred_check_branch
      %30 = sbr.rel (0) target = $region21
    $region20: #{tpu_custom_call.1} parent=1 // pred_region
      %s32 = ssub.s32 16, 16
      %33 = vsyncadd [#allocation6], %s32
      %s35 = sshll.u32 %s4, 4
      %s36 = int_to_ptr.vmem [resolvable:$true] %s35
      %38 = dma.vmem_to_smem %s36, 16, [#allocation5], [#allocation6]
    $region21: #{tpu_custom_call.1} parent=1 // pred_fallthru
      _
    // Predicated region
    $region22: #{tpu_custom_call.1} parent=1 // pred_check
      _
    $region23: #{tpu_custom_call.1} parent=1 // pred_check_branch
      %40 = sbr.rel (0) target = $region25
    $region24: #{tpu_custom_call.1} parent=1 // pred_region
      %41 = dma.done [#allocation4], 16
    $region25: #{tpu_custom_call.1} parent=1 // pred_fallthru
      _
    // Predicated region
    $region26: #{tpu_custom_call.1} parent=1 // pred_check
      _
    $region27: #{tpu_custom_call.1} parent=1 // pred_check_branch
      %43 = sbr.rel (0) target = $region29
    $region28: #{tpu_custom_call.1} parent=1 // pred_region
      %44 = dma.done [#allocation6], 16
    $region29: #{tpu_custom_call.1} parent=1 // pred_fallthru
      _
    %45 = sfence
    %v46 = vlaneseq
    %v47 = vand.u32 %v46, 127
    %s48 = smul.u32 0, 8
    %v49 = vstv %s48
    %v50 = vadd.s32 %v49, %v47
    %vm51 = vcmp.lt.s32.totalorder %v50, 8
    %v52 = vld [vmem:[%s1] sm:$0xf]
    %v53 = vld [vmem:[%s2] sm:$0x1f]
    %v55 = vrot.slane %v53, 1
    %vm57 = vcmp.ge.f32.partialorder %v53, %v55
    %s58 = sld [smem:[#allocation2]]
    %s59 = sld [smem:[#allocation5]]
    %v60 = vstv %s59
    %v61 = vstv %s58
    %v62 = vsel %vm57, %v60, %v61
    %v63 = vsel %vm57, %v61, %v60
    %v64 = vld [vmem:[%s0] sm:$0xf]
    %v65 = vsub.f32 %v64, %v52
    %v66 = vand.u32 2147483647, %v65
    %vm67 = vcmp.lt.f32.partialorder %v66, 1.0
    %v68 = vmul.f32 %v66, 0.5
    %v69 = vmul.f32 %v68, %v66
    %v70 = vsub.f32 %v66, 0.5
    %v71 = vsel %vm67, %v69, %v70
    %vm72 = vcmask 60416
    %v73 = vsel %vm72, %v71, 0.0
    %v74 = vrot.slane %v73, 4
    %v75 = vadd.f32 %v73, %v74
    %v76 = vrot.slane %v75, 2
    %v77 = vadd.f32 %v75, %v76
    %v78 = vrot.slane %v77, 1
    %v79 = vadd.f32 %v77, %v78
    %v80 = vmul.f32 %v62, %v79
    %v81 = vadd.f32 %v80, 0.0
    %v82 = vld [vmem:[%s0 + $0x4] sm:$0xf]
    %v83 = vsub.f32 %v82, %v52
    %v84 = vand.u32 2147483647, %v83
    %vm85 = vcmp.lt.f32.partialorder %v84, 1.0
    %v86 = vmul.f32 %v84, 0.5
    %v87 = vmul.f32 %v86, %v84
    %v88 = vsub.f32 %v84, 0.5
    %v89 = vsel %vm85, %v87, %v88
    %v90 = vsel %vm72, %v89, 0.0
    %v91 = vrot.slane %v90, 4
    %v92 = vadd.f32 %v90, %v91
    %v93 = vrot.slane %v92, 2
    %v94 = vadd.f32 %v92, %v93
    %v95 = vrot.slane %v94, 1
    %v96 = vadd.f32 %v94, %v95
    %v97 = vmul.f32 %v63, %v96
    %v98 = vadd.f32 %v81, %v97
    %s99 = sld [smem:[#allocation2 + $0x1]]
    %s100 = sld [smem:[#allocation5 + $0x1]]
    %v101 = vstv %s100
    %v102 = vstv %s99
    %v103 = vsel %vm57, %v101, %v102
    %v104 = vsel %vm57, %v102, %v101
    %v105 = vld [vmem:[%s0 + $0x8] sm:$0xf]
    %v106 = vsub.f32 %v105, %v52
    %v107 = vand.u32 2147483647, %v106
    %vm108 = vcmp.lt.f32.partialorder %v107, 1.0
    %v109 = vmul.f32 %v107, 0.5
    %v110 = vmul.f32 %v109, %v107
    %v111 = vsub.f32 %v107, 0.5
    %v112 = vsel %vm108, %v110, %v111
    %v113 = vsel %vm72, %v112, 0.0
    %v114 = vrot.slane %v113, 4
    %v115 = vadd.f32 %v113, %v114
    %v116 = vrot.slane %v115, 2
    %v117 = vadd.f32 %v115, %v116
    %v118 = vrot.slane %v117, 1
    %v119 = vadd.f32 %v117, %v118
    %v120 = vmul.f32 %v103, %v119
    %v122 = vrot.slane %v120, 2
    %v124 = vadd.f32 %v98, %v122
    %v125 = vld [vmem:[%s0 + $0xc] sm:$0xf]
    %v126 = vsub.f32 %v125, %v52
    %v127 = vand.u32 2147483647, %v126
    %vm128 = vcmp.lt.f32.partialorder %v127, 1.0
    %v129 = vmul.f32 %v127, 0.5
    %v130 = vmul.f32 %v129, %v127
    %v131 = vsub.f32 %v127, 0.5
    %v132 = vsel %vm128, %v130, %v131
    %v133 = vsel %vm72, %v132, 0.0
    %v134 = vrot.slane %v133, 4
    %v135 = vadd.f32 %v133, %v134
    %v136 = vrot.slane %v135, 2
    %v137 = vadd.f32 %v135, %v136
    %v138 = vrot.slane %v137, 1
    %v139 = vadd.f32 %v137, %v138
    %v140 = vmul.f32 %v104, %v139
    %v142 = vrot.slane %v140, 2
    %v144 = vadd.f32 %v124, %v142
    %v145 = vrot.slane %v53, 4
    %v147 = vmul.f32 %v144, %v145
    %v148 = vsel %vm51, %v147, 0.0
    %vm149 = vcmask 57344
    %v150 = vsel %vm149, %v148, 0.0
    %151 = vadd.xlane.f32.xlu0 %v150
    %v152 = vpop.xlane.xlu0 %151
    %v153 = vrot.slane %v152, 4
    %v154 = vadd.f32 %v152, %v153
    %v155 = vrot.slane %v154, 2
    %v156 = vadd.f32 %v154, %v155
    %v157 = vrot.slane %v156, 1
    %v158 = vadd.f32 %v156, %v157
    %s159 = vtos %v158
    %v160 = vstv %s159
    %161 = vst [vmem:[#allocation7] sm:$0x1] %v160
    // Predicated region
    $region30: #{tpu_custom_call.1} parent=1 // pred_check
      _
    $region31: #{tpu_custom_call.1} parent=1 // pred_check_branch
      %163 = sbr.rel (0) target = $region33
    $region32: #{tpu_custom_call.1} parent=1 // pred_region
      %s165 = ssub.s32 16, 16
      %166 = vsyncadd [#allocation3], %s165
      %s168 = sshll.u32 [#allocation7], 4
      %s169 = int_to_ptr.vmem [resolvable:$true] %s168
      %171 = dma.vmem_to_hbm [thread:$0]  %s169, 16, %s5, [#allocation3]
    $region33: #{tpu_custom_call.1} parent=1 // pred_fallthru
      _
    // Predicated region
    $region34: #{tpu_custom_call.1} parent=1 // pred_check
      _
    $region35: #{tpu_custom_call.1} parent=1 // pred_check_branch
      %173 = sbr.rel (0) target = $region37
    $region36: #{tpu_custom_call.1} parent=1 // pred_region
      %174 = dma.done [#allocation3], 16
    $region37: #{tpu_custom_call.1} parent=1 // pred_fallthru
      _
    %175 = vsyncpa [#allocation3], 1
    %176 = vsyncpa [#allocation4], 1
    %177 = vsyncpa [#allocation6], 1

</llo_original>
